<compile_context>
chip_gen: v5e
topology: v5e:2x2
jax: 0.10.0
libtpu: 0.0.40
codegen_flags: <defaults>
</compile_context>

<pallas_src>
import functools

import jax
import jax.numpy as jnp
from jax.experimental import pallas as pl
from jax.experimental.pallas import tpu as pltpu


def _conv_rowtile_kernel(x_ref, w_ref, b_ref, o_ref, *, tile_ho):
    # x_ref: (1, Hq, 2, Wo, K)   width-im2col'd image, rows split (pair, parity)
    # w_ref: (3, K, Cout)        K = 3*Cin (kj folded into K); one slab per ki
    # b_ref: (1, Cout)           f32 bias
    # o_ref: (1, tile_ho, Wo, Cout)
    _, _, _, wo, k = x_ref.shape
    cout = w_ref.shape[-1]
    m = tile_ho * wo

    r0 = pl.multiple_of(pl.program_id(1) * tile_ho, tile_ho)
    # Output rows [r0, r0+tile_ho) read padded rows 2r, 2r+1, 2r+2, i.e.
    # (pair r, parity 0), (pair r, parity 1), (pair r+1, parity 0).
    x0 = x_ref[0, pl.ds(r0, tile_ho), 0]          # ki = 0
    x1 = x_ref[0, pl.ds(r0, tile_ho), 1]          # ki = 1
    x2 = x_ref[0, pl.ds(r0 + 1, tile_ho), 0]      # ki = 2

    acc = jnp.dot(x0.reshape(m, k), w_ref[0], preferred_element_type=jnp.float32)
    acc = acc + jnp.dot(x1.reshape(m, k), w_ref[1],
                        preferred_element_type=jnp.float32)
    acc = acc + jnp.dot(x2.reshape(m, k), w_ref[2],
                        preferred_element_type=jnp.float32)
    acc = acc + b_ref[...]                        # (1, Cout) broadcasts once
    o_ref[...] = acc.reshape(1, tile_ho, wo, cout).astype(o_ref.dtype)


def _row_tile(ho, target=8):
    """Largest divisor of ho that is <= target (keeps blocks exact)."""
    t = min(ho, target)
    while ho % t:
        t -= 1
    return t


def conv3x3_s2_p1(x_nhwc, w_taps, bias, *, apply_relu=False, compute_dtype=None):
    """3x3 conv, stride 2, padding 1.  x_nhwc: (B,H,W,Cin); w_taps: (3,3*Cin,Cout)."""
    b, h, w, cin = x_nhwc.shape
    cout = w_taps.shape[-1]
    ho, wo = (h + 1) // 2, (w + 1) // 2
    out_dtype = x_nhwc.dtype
    compute_dtype = compute_dtype or out_dtype

    if apply_relu:                    # once; XLA fuses it into the im2col build
        x_nhwc = jnp.maximum(x_nhwc, 0)
    x_nhwc = x_nhwc.astype(compute_dtype)

    # Width-only im2col: zero-pad, take the 3 kj-shifted stride-2 column slices
    # and fold them into channels -> (B, Hp, Wo, 3*Cin)  (~1.5x input bytes).
    hp = 2 * (ho + 1)                 # even number of padded rows
    xp = jnp.pad(x_nhwc, ((0, 0), (1, hp - h - 1), (1, 1), (0, 0)))
    xcol = jnp.concatenate(
        [xp[:, :, kj:kj + 2 * wo:2, :] for kj in range(3)], axis=-1)
    k = 3 * cin
    xcol = xcol.reshape(b, ho + 1, 2, wo, k)      # rows -> (pair, parity)

    w_taps = w_taps.astype(compute_dtype)
    bias2 = bias.reshape(1, cout).astype(jnp.float32)

    tile_ho = _row_tile(ho)
    kernel = functools.partial(_conv_rowtile_kernel, tile_ho=tile_ho)
    return pl.pallas_call(
        kernel,
        out_shape=jax.ShapeDtypeStruct((b, ho, wo, cout), out_dtype),
        grid_spec=pltpu.PrefetchScalarGridSpec(
            num_scalar_prefetch=0,
            grid=(b, ho // tile_ho),
            in_specs=[
                # Full image per batch element; block index is independent of
                # the row-tile axis, so it stays VMEM-resident across tiles.
                pl.BlockSpec((1, ho + 1, 2, wo, k), lambda i, j: (i, 0, 0, 0, 0)),
                pl.BlockSpec((3, k, cout), lambda i, j: (0, 0, 0)),
                pl.BlockSpec((1, cout), lambda i, j: (0, 0)),
            ],
            out_specs=pl.BlockSpec((1, tile_ho, wo, cout),
                                   lambda i, j: (i, j, 0, 0)),
        ),
        compiler_params=pltpu.CompilerParams(
            dimension_semantics=("parallel", "parallel"),
            vmem_limit_bytes=32 * 1024 * 1024),
    )(xcol, w_taps, bias2)


class LastLevelP6P7:
    """JAX/Pallas port of the RetinaNet P6/P7 head (forward only)."""

    def __init__(self, in_channels, out_channels, key, compute_dtype=jnp.float32):
        # compute_dtype=jnp.bfloat16 is recommended on v6e/v7x (f32 accumulate).
        self.compute_dtype = compute_dtype
        k6, k7 = jax.random.split(key)
        # kaiming_uniform_ with a=1: bound = sqrt(3 / fan_in), fan_in = Cin*3*3
        bound6 = (3.0 / (in_channels * 9)) ** 0.5
        bound7 = (3.0 / (out_channels * 9)) ** 0.5
        # PyTorch conv weight layout: (Cout, Cin, kH, kW)
        self.w6_oihw = jax.random.uniform(
            k6, (out_channels, in_channels, 3, 3), jnp.float32, -bound6, bound6)
        self.w7_oihw = jax.random.uniform(
            k7, (out_channels, out_channels, 3, 3), jnp.float32, -bound7, bound7)
        # Kernel layout: (ki, kj*Cin, Cout) — kj folded into the matmul K dim.
        self.w6 = jnp.transpose(self.w6_oihw, (2, 3, 1, 0)).reshape(
            3, 3 * in_channels, out_channels)
        self.w7 = jnp.transpose(self.w7_oihw, (2, 3, 1, 0)).reshape(
            3, 3 * out_channels, out_channels)
        self.b6 = jnp.zeros((out_channels,), jnp.float32)
        self.b7 = jnp.zeros((out_channels,), jnp.float32)
        self.use_P5 = in_channels == out_channels

    def __call__(self, c5, p5):
        # c5, p5 are NCHW (PyTorch convention).  p6 -> p7 is chained in NHWC;
        # only the boundary tensors are transposed.
        x = p5 if self.use_P5 else c5
        x = jnp.transpose(x, (0, 2, 3, 1))                       # NCHW -> NHWC
        p6 = conv3x3_s2_p1(x, self.w6, self.b6, apply_relu=False,
                           compute_dtype=self.compute_dtype)
        p7 = conv3x3_s2_p1(p6, self.w7, self.b7, apply_relu=True,
                           compute_dtype=self.compute_dtype)
        return [jnp.transpose(p6, (0, 3, 1, 2)),                 # back to NCHW
                jnp.transpose(p7, (0, 3, 1, 2))]


def _ref_conv_nchw(x, w_oihw, b, stride=2, pad=1):
    y = jax.lax.conv_general_dilated(
        x, w_oihw, (stride, stride), ((pad, pad), (pad, pad)),
        dimension_numbers=("NCHW", "OIHW", "NCHW"))
    return y + b[None, :, None, None]


if __name__ == "__main__":
    B, C_IN, C_OUT, H, W = 2, 4, 4, 16, 16
    key = jax.random.PRNGKey(0)
    k_c5, k_p5, k_params = jax.random.split(key, 3)
    c5 = jax.random.normal(k_c5, (B, C_IN, H, W), jnp.float32)
    p5 = jax.random.normal(k_p5, (B, C_OUT, H, W), jnp.float32)

    # f32 compute path: matches the PyTorch module semantics.
    module = LastLevelP6P7(C_IN, C_OUT, k_params)
    p6, p7 = module(c5, p5)
    p6 = jax.block_until_ready(p6)
    p7 = jax.block_until_ready(p7)

    x_ref = p5 if module.use_P5 else c5
    p6_ref = _ref_conv_nchw(x_ref, module.w6_oihw, module.b6)
    p7_ref = _ref_conv_nchw(jnp.maximum(p6_ref, 0.0), module.w7_oihw, module.b7)
    assert p6.shape == (B, C_OUT, (H + 1) // 2, (W + 1) // 2)
    assert p7.shape == (B, C_OUT, (H + 3) // 4, (W + 3) // 4)
    assert jnp.allclose(p6, p6_ref, rtol=1e-4, atol=1e-4)
    assert jnp.allclose(p7, p7_ref, rtol=1e-4, atol=1e-4)

    # bf16 compute path (v6e/v7x recommendation): f32 accumulate, loose check.
    module_bf16 = LastLevelP6P7(C_IN, C_OUT, k_params, compute_dtype=jnp.bfloat16)
    p6b, p7b = module_bf16(c5, p5)
    p6b = jax.block_until_ready(p6b)
    p7b = jax.block_until_ready(p7b)
    assert jnp.allclose(p6b, p6_ref, rtol=2e-1, atol=2e-1)
    assert jnp.allclose(p7b, p7_ref, rtol=2e-1, atol=2e-1)

    print("KERNEL_OK")
</pallas_src>

<mosaic_0001>
module attributes {stable_mosaic.version = 11 : i64} {
  func.func @_conv_rowtile_kernel(%arg0: i32, %arg1: i32, %arg2: memref<1x9x2x8x12xf32, #tpu.memory_space<vmem>>, %arg3: memref<3x12x4xf32, #tpu.memory_space<vmem>>, %arg4: memref<1x4xf32, #tpu.memory_space<vmem>>, %arg5: memref<1x8x8x4xf32, #tpu.memory_space<vmem>>) attributes {dimension_semantics = [#tpu.dimension_semantics<parallel>, #tpu.dimension_semantics<parallel>], iteration_bounds = array<i64: 2, 1>, scalar_prefetch = 0 : i64, scratch_operands = 0 : i64, tpu.core_type = #tpu.core_type<tc>, window_params = [{transform_indices = @transform_0, window_bounds = array<i64: 1, 9, 2, 8, 12>}, {pipeline_mode = #tpu.pipeline_mode<synchronous>, transform_indices = @transform_1, window_bounds = array<i64: 3, 12, 4>}, {pipeline_mode = #tpu.pipeline_mode<synchronous>, transform_indices = @transform_2, window_bounds = array<i64: 1, 4>}, {transform_indices = @transform_3, window_bounds = array<i64: 1, 8, 8, 4>}]} {
    %c8_i32 = arith.constant 8 : i32
    %0 = arith.muli %arg1, %c8_i32 : i32
    %1 = tpu.assume_multiple %0, 8 : i32
    %c0 = arith.constant 0 : index
    %2 = arith.index_cast %1 : i32 to index
    %c0_0 = arith.constant 0 : index
    %c0_1 = arith.constant 0 : index
    %c0_2 = arith.constant 0 : index
    %3 = vector.load %arg2[%c0, %2, %c0_0, %c0_1, %c0_2] : memref<1x9x2x8x12xf32, #tpu.memory_space<vmem>>, vector<1x8x1x8x12xf32>
    %4 = vector.shape_cast %3 : vector<1x8x1x8x12xf32> to vector<8x8x12xf32>
    %c0_3 = arith.constant 0 : index
    %5 = arith.index_cast %1 : i32 to index
    %c1 = arith.constant 1 : index
    %c0_4 = arith.constant 0 : index
    %c0_5 = arith.constant 0 : index
    %6 = vector.load %arg2[%c0_3, %5, %c1, %c0_4, %c0_5] : memref<1x9x2x8x12xf32, #tpu.memory_space<vmem>>, vector<1x8x1x8x12xf32>
    %7 = vector.shape_cast %6 : vector<1x8x1x8x12xf32> to vector<8x8x12xf32>
    %c1_i32 = arith.constant 1 : i32
    %8 = arith.addi %1, %c1_i32 : i32
    %c0_6 = arith.constant 0 : index
    %9 = arith.index_cast %8 : i32 to index
    %c0_7 = arith.constant 0 : index
    %c0_8 = arith.constant 0 : index
    %c0_9 = arith.constant 0 : index
    %10 = vector.load %arg2[%c0_6, %9, %c0_7, %c0_8, %c0_9] : memref<1x9x2x8x12xf32, #tpu.memory_space<vmem>>, vector<1x8x1x8x12xf32>
    %11 = vector.shape_cast %10 : vector<1x8x1x8x12xf32> to vector<8x8x12xf32>
    %12 = vector.shape_cast %4 : vector<8x8x12xf32> to vector<64x12xf32>
    %c0_10 = arith.constant 0 : index
    %c0_11 = arith.constant 0 : index
    %c0_12 = arith.constant 0 : index
    %13 = vector.load %arg3[%c0_10, %c0_11, %c0_12] : memref<3x12x4xf32, #tpu.memory_space<vmem>>, vector<1x12x4xf32>
    %14 = vector.shape_cast %13 : vector<1x12x4xf32> to vector<12x4xf32>
    %cst = arith.constant dense<0.000000e+00> : vector<64x4xf32>
    %15 = tpu.matmul %12, %14, %cst {dimension_numbers = #tpu.dot_dimension_numbers<[1], [0], [0], [1], [0, 0, 1, 1], [], []>} : vector<64x12xf32>, vector<12x4xf32>, vector<64x4xf32> -> vector<64x4xf32>
    %16 = vector.shape_cast %7 : vector<8x8x12xf32> to vector<64x12xf32>
    %c1_13 = arith.constant 1 : index
    %c0_14 = arith.constant 0 : index
    %c0_15 = arith.constant 0 : index
    %17 = vector.load %arg3[%c1_13, %c0_14, %c0_15] : memref<3x12x4xf32, #tpu.memory_space<vmem>>, vector<1x12x4xf32>
    %18 = vector.shape_cast %17 : vector<1x12x4xf32> to vector<12x4xf32>
    %cst_16 = arith.constant dense<0.000000e+00> : vector<64x4xf32>
    %19 = tpu.matmul %16, %18, %cst_16 {dimension_numbers = #tpu.dot_dimension_numbers<[1], [0], [0], [1], [0, 0, 1, 1], [], []>} : vector<64x12xf32>, vector<12x4xf32>, vector<64x4xf32> -> vector<64x4xf32>
    %20 = arith.addf %15, %19 : vector<64x4xf32>
    %21 = vector.shape_cast %11 : vector<8x8x12xf32> to vector<64x12xf32>
    %c2 = arith.constant 2 : index
    %c0_17 = arith.constant 0 : index
    %c0_18 = arith.constant 0 : index
    %22 = vector.load %arg3[%c2, %c0_17, %c0_18] : memref<3x12x4xf32, #tpu.memory_space<vmem>>, vector<1x12x4xf32>
    %23 = vector.shape_cast %22 : vector<1x12x4xf32> to vector<12x4xf32>
    %cst_19 = arith.constant dense<0.000000e+00> : vector<64x4xf32>
    %24 = tpu.matmul %21, %23, %cst_19 {dimension_numbers = #tpu.dot_dimension_numbers<[1], [0], [0], [1], [0, 0, 1, 1], [], []>} : vector<64x12xf32>, vector<12x4xf32>, vector<64x4xf32> -> vector<64x4xf32>
    %25 = arith.addf %20, %24 : vector<64x4xf32>
    %c0_20 = arith.constant 0 : index
    %c0_21 = arith.constant 0 : index
    %26 = vector.load %arg4[%c0_20, %c0_21] : memref<1x4xf32, #tpu.memory_space<vmem>>, vector<1x4xf32>
    %27 = vector.broadcast %26 : vector<1x4xf32> to vector<64x4xf32>
    %28 = arith.addf %25, %27 : vector<64x4xf32>
    %29 = vector.shape_cast %28 : vector<64x4xf32> to vector<1x8x8x4xf32>
    %c0_22 = arith.constant 0 : index
    %c0_23 = arith.constant 0 : index
    %c0_24 = arith.constant 0 : index
    %c0_25 = arith.constant 0 : index
    %30 = vector.load %arg5[%c0_22, %c0_23, %c0_24, %c0_25] : memref<1x8x8x4xf32, #tpu.memory_space<vmem>>, vector<1x8x8x4xf32>
    tpu.vector_store %arg5[%c0_22, %c0_23, %c0_24, %c0_25], %29 {strides = array<i32>} : memref<1x8x8x4xf32, #tpu.memory_space<vmem>>, vector<1x8x8x4xf32>,
    return
  }
  func.func @transform_0(%arg0: i32, %arg1: i32) -> (i32, i32, i32, i32, i32) {
    %c0_i32 = arith.constant 0 : i32
    %c0_i32_0 = arith.constant 0 : i32
    %c0_i32_1 = arith.constant 0 : i32
    %c0_i32_2 = arith.constant 0 : i32
    %c0_i32_3 = arith.constant 0 : i32
    return %arg0, %c0_i32, %c0_i32_0, %c0_i32_1, %c0_i32_2 : i32, i32, i32, i32, i32
  }
  func.func @transform_1(%arg0: i32, %arg1: i32) -> (i32, i32, i32) {
    %c0_i32 = arith.constant 0 : i32
    %c0_i32_0 = arith.constant 0 : i32
    %c0_i32_1 = arith.constant 0 : i32
    %c0_i32_2 = arith.constant 0 : i32
    return %c0_i32, %c0_i32_0, %c0_i32_1 : i32, i32, i32
  }
  func.func @transform_2(%arg0: i32, %arg1: i32) -> (i32, i32) {
    %c0_i32 = arith.constant 0 : i32
    %c0_i32_0 = arith.constant 0 : i32
    %c0_i32_1 = arith.constant 0 : i32
    return %c0_i32, %c0_i32_0 : i32, i32
  }
  func.func @transform_3(%arg0: i32, %arg1: i32) -> (i32, i32, i32, i32) {
    %c0_i32 = arith.constant 0 : i32
    %c0_i32_0 = arith.constant 0 : i32
    %c0_i32_1 = arith.constant 0 : i32
    return %arg0, %arg1, %c0_i32, %c0_i32_0 : i32, i32, i32, i32
  }
}

</mosaic_0001>

<llo_original>
// kernel: tpu_custom_call.1
$region0: #{tpu_custom_call.1}
  #allocation0 [shape = 'u32[]', space=smem, size = 0x4, offset = 0x4, fixed_abs, tag = 'smem constant byte address 0x4 - core index']
  #allocation1 [shape = 'u32[72,128]{1,0:T(1,128)}', space=vmem, size = 0x9000, scoped, tag = 'internal scratch']
  %s0 = inlined_call_operand.hbm [shape: f32[2,9,2,8,12], index: 0, kind: input, shape index: {}]
  %s1 = inlined_call_operand.vmem [shape: f32[3,12,4], index: 1, kind: input, shape index: {}]
  %s2 = inlined_call_operand.vmem [shape: f32[1,4], index: 2, kind: input, shape index: {}]
  %s3 = inlined_call_operand.vmem [shape: f32[2,8,8,4], index: 3, kind: output, shape index: {}]
  %s4 = sld [smem:[#allocation0]]
  $region49: #{tpu_custom_call.1} parent=0
    _
  %s6 = ssub.s32 1, %s4
  %s7 = scalar_select 0, %s6, %s4
  $region1: #{tpu_custom_call.1} parent=0
    #allocation2 [shape = 'u8[147456]{0}', space=vmem, size = 0x24000, scoped, tag = 'input window, operand 0']
    #allocation3 [shape = 's32[2]{0}', space=sflag, size = 0x8, scoped, tag = 'scoped memory for tpu_custom_call.1']
    %8 = vsyncpa [#allocation3], 0
    %s9 = scalar_lea.sflag [#allocation3], 1
    %10 = vsyncpa %s9, 0
    loop: start=0, step=1, limit=4
    $region2: #{tpu_custom_call.1} parent=1 // loop_pre_header
      _
    $region3: #{tpu_custom_call.1} parent=1 // loop_header
      %s12 = sphi 0, %s16
      %p13 = scmp.ge.s32.totalorder %s12, 4
      %s19 = sphi 0, %s31
      %s20 = sphi 0, %s27
      %s21 = sphi 0, %s19
      %s22 = sphi 0, %s20
      %s23 = sphi 0, %s21
      %s24 = sphi 0, %s22
      %s34 = sphi 0, %s36
      %s37 = sphi 0, %s34
      %s38 = sphi 0, %s37
      %s54 = sphi 0, %s38
      %s58 = sphi 0, %s58
      %s60 = sphi 0, %s58
      %s61 = sphi 0, %s60
      %s75 = sphi 0, %s61
      %s79 = sphi 0, %s79
      %s81 = sphi 0, %s79
      %s82 = sphi 0, %s81
      %s96 = sphi 0, %s82
      %s104 = sphi 0, %s106
      %s107 = sphi 0, %s104
      %s108 = sphi 0, %s107
      %s124 = sphi 0, %s108
    $region4: #{tpu_custom_call.1} parent=1 // loop_header_branch
      %15 = sbr.rel (%p13) target = $region8
    $region5: #{tpu_custom_call.1} parent=1 // loop_body
      %s17 = ssub.s32 %s12, 1
      %s18 = ssub.s32 %s12, 2
      %s25 = sadd.s32 1, %s20
      %p26 = scmp.ge.s32.totalorder %s25, 1
      %s27 = scalar_select %p26, 0, %s25
      %s28 = sadd.s32 1, %s19
      %s29 = scalar_select %p26, %s28, %s19
      %p30 = scmp.ge.s32.totalorder %s29, 2
      %s31 = scalar_select %p30, 0, %s29
      %s32 = ssub.s32 %s19, %s31
      %p33 = scmp.eq.s32.totalorder %s32, 0
      %s35 = sadd.s32 %s34, 1
      %s36 = scalar_select %p33, %s34, %s35
      %p39 = pneg %p33
      %p40 = scmp.eq.s32.totalorder %s12, 1
      %p41 = por %p39, %p40
      %p42 = scmp.ne.s32.totalorder %s34, %s37
      %p43 = scmp.eq.s32.totalorder %s12, 0
      %p44 = por %p42, %p43
      %p45 = scmp.ne.s32.totalorder %s34, %s37
      %p46 = scmp.eq.s32.totalorder %s17, 1
      %p47 = por %p45, %p46
      %p48 = scmp.ne.s32.totalorder %s37, %s38
      %p49 = scmp.eq.s32.totalorder %s17, 0
      %p50 = por %p48, %p49
      %p51 = scmp.ne.s32.totalorder %s37, %s38
      %p52 = scmp.eq.s32.totalorder %s18, 1
      %p53 = por %p51, %p52
      %p55 = scmp.ne.s32.totalorder %s38, %s54
      %p56 = scmp.eq.s32.totalorder %s18, 0
      %p57 = por %p55, %p56
      %s59 = sadd.s32 %s58, 1
      %p62 = scmp.eq.s32.totalorder %s12, 1
      %p63 = scmp.ne.s32.totalorder %s58, %s60
      %p64 = scmp.eq.s32.totalorder %s12, 0
      %p65 = por %p63, %p64
      %p66 = scmp.ne.s32.totalorder %s58, %s60
      %p67 = scmp.eq.s32.totalorder %s17, 1
      %p68 = por %p66, %p67
      %p69 = scmp.ne.s32.totalorder %s60, %s61
      %p70 = scmp.eq.s32.totalorder %s17, 0
      %p71 = por %p69, %p70
      %p72 = scmp.ne.s32.totalorder %s60, %s61
      %p73 = scmp.eq.s32.totalorder %s18, 1
      %p74 = por %p72, %p73
      %p76 = scmp.ne.s32.totalorder %s61, %s75
      %p77 = scmp.eq.s32.totalorder %s18, 0
      %p78 = por %p76, %p77
      %s80 = sadd.s32 %s79, 1
      %p83 = scmp.eq.s32.totalorder %s12, 1
      %p84 = scmp.ne.s32.totalorder %s79, %s81
      %p85 = scmp.eq.s32.totalorder %s12, 0
      %p86 = por %p84, %p85
      %p87 = scmp.ne.s32.totalorder %s79, %s81
      %p88 = scmp.eq.s32.totalorder %s17, 1
      %p89 = por %p87, %p88
      %p90 = scmp.ne.s32.totalorder %s81, %s82
      %p91 = scmp.eq.s32.totalorder %s17, 0
      %p92 = por %p90, %p91
      %p93 = scmp.ne.s32.totalorder %s81, %s82
      %p94 = scmp.eq.s32.totalorder %s18, 1
      %p95 = por %p93, %p94
      %p97 = scmp.ne.s32.totalorder %s82, %s96
      %p98 = scmp.eq.s32.totalorder %s18, 0
      %p99 = por %p97, %p98
      %s100 = ssub.s32 %s19, %s31
      %s101 = ssub.s32 %s20, %s27
      %s102 = sor.u32 %s100, %s101
      %p103 = scmp.eq.s32.totalorder %s102, 0
      %s105 = sadd.s32 %s104, 1
      %s106 = scalar_select %p103, %s104, %s105
      %p109 = pneg %p103
      %p110 = scmp.eq.s32.totalorder %s12, 1
      %p111 = por %p109, %p110
      %p112 = scmp.ne.s32.totalorder %s104, %s107
      %p113 = scmp.eq.s32.totalorder %s12, 0
      %p114 = por %p112, %p113
      %p115 = scmp.ne.s32.totalorder %s104, %s107
      %p116 = scmp.eq.s32.totalorder %s17, 1
      %p117 = por %p115, %p116
      %p118 = scmp.ne.s32.totalorder %s107, %s108
      %p119 = scmp.eq.s32.totalorder %s17, 0
      %p120 = por %p118, %p119
      %p121 = scmp.ne.s32.totalorder %s107, %s108
      %p122 = scmp.eq.s32.totalorder %s18, 1
      %p123 = por %p121, %p122
      %p125 = scmp.ne.s32.totalorder %s108, %s124
      %p126 = scmp.eq.s32.totalorder %s18, 0
      %p127 = por %p125, %p126
      %p128 = scmp.le.s32.totalorder 1, %s12
      %p129 = scmp.lt.s32.totalorder %s12, 3
      %p130 = pnand %p128, %p129
      %p131 = pneg %p130
      // Predicated region
      $region9: #{tpu_custom_call.1} parent=5 // pred_check
        _
      $region10: #{tpu_custom_call.1} parent=5 // pred_check_branch
        %133 = sbr.rel (%p130) target = $region12
      $region11: #{tpu_custom_call.1} parent=5 // pred_region
        %s134 = ssub.s32 %s12, 1
        // Predicated region
        $region13: #{tpu_custom_call.1} parent=11 // pred_check
          %p135 = pneg %p71
        $region14: #{tpu_custom_call.1} parent=11 // pred_check_branch
          %137 = sbr.rel (%p135) target = $region16
        $region15: #{tpu_custom_call.1} parent=11 // pred_region
          _
        $region16: #{tpu_custom_call.1} parent=11 // pred_fallthru
          _
        // Predicated region
        $region17: #{tpu_custom_call.1} parent=11 // pred_check
          %p138 = pneg %p92
        $region18: #{tpu_custom_call.1} parent=11 // pred_check_branch
          %140 = sbr.rel (%p138) target = $region20
        $region19: #{tpu_custom_call.1} parent=11 // pred_region
          _
        $region20: #{tpu_custom_call.1} parent=11 // pred_fallthru
          _
      $region12: #{tpu_custom_call.1} parent=5 // pred_fallthru
        _
      %p141 = scmp.lt.s32.totalorder %s12, 2
      // Predicated region
      $region21: #{tpu_custom_call.1} parent=5 // pred_check
        %p142 = pneg %p141
      $region22: #{tpu_custom_call.1} parent=5 // pred_check_branch
        %144 = sbr.rel (%p142) target = $region24
      $region23: #{tpu_custom_call.1} parent=5 // pred_region
        // Predicated region
        $region25: #{tpu_custom_call.1} parent=23 // pred_check
          %p145 = pneg %p44
        $region26: #{tpu_custom_call.1} parent=23 // pred_check_branch
          %147 = sbr.rel (%p145) target = $region28
        $region27: #{tpu_custom_call.1} parent=23 // pred_region
          %s148 = sand.u32 %s34, 1
          %s149 = scalar_lea.sflag [#allocation3], %s148
          %s150 = sand.u32 %s34, 1
          %s151 = smul.addr %s150, 144
          %s152 = scalar_lea.vmem [#allocation2], %s151
          %154 = vsyncadd %s149, 0
          %s155 = smul.addr %s19, 18
          %s156 = smul.addr %s155, 8
          %s157 = scalar_lea.hbm %s0, %s156
          %s158 = sshll.u32 %s157, 4
          %s159 = int_to_ptr.hbm [resolvable:$true] %s158
          %s160 = sshll.u32 %s152, 4
          %s161 = int_to_ptr.vmem [resolvable:$true] %s160
          %166 = dma.hbm_to_vmem [thread:$0]  %s159, 2304, %s161, %s149, 128, 128, 8
        $region28: #{tpu_custom_call.1} parent=23 // pred_fallthru
          _
      $region24: #{tpu_custom_call.1} parent=5 // pred_fallthru
        _
      %p167 = scmp.le.s32.totalorder 1, %s12
      %p168 = scmp.lt.s32.totalorder %s12, 3
      %p169 = pnand %p167, %p168
      %p170 = pneg %p169
      // Predicated region
      $region29: #{tpu_custom_call.1} parent=5 // pred_check
        _
      $region30: #{tpu_custom_call.1} parent=5 // pred_check_branch
        %172 = sbr.rel (%p169) target = $region32
      $region31: #{tpu_custom_call.1} parent=5 // pred_region
        %s173 = ssub.s32 %s12, 1
        %s174 = sand.u32 %s37, 1
        %s175 = scalar_lea.sflag [#allocation3], %s174
        %s176 = sand.u32 %s37, 1
        %s177 = smul.addr %s176, 144
        %s178 = scalar_lea.vmem [#allocation2], %s177
        // Predicated region
        $region33: #{tpu_custom_call.1} parent=31 // pred_check
          %p179 = pneg %p50
        $region34: #{tpu_custom_call.1} parent=31 // pred_check_branch
          %181 = sbr.rel (%p179) target = $region36
        $region35: #{tpu_custom_call.1} parent=31 // pred_region
          %183 = dma.done %s175, 2304
        $region36: #{tpu_custom_call.1} parent=31 // pred_fallthru
          _
        %s184 = sand.u32 %s37, 1
        %s185 = scalar_lea.sflag [#allocation3], %s184
        %s186 = sand.u32 %s37, 1
        %s187 = smul.addr %s186, 144
        %s188 = scalar_lea.vmem [#allocation2], %s187
        %p189 = pneg %p50
        %p190 = pneg %p47
        %p191 = pneg %p71
        %p192 = pneg %p68
        %p193 = pneg %p92
        %p194 = pneg %p89
        %p195 = pneg %p120
        %p196 = pneg %p117
        %s197 = smul.u32 8, %s22
        %p198 = scmp.lt.s32.totalorder %s21, 1
        %s199 = scalar_select %p198, %s21, 1
        %p200 = scmp.lt.s32.totalorder %s197, 7
        %s201 = scalar_select %p200, %s197, 7
        %s202 = smul.addr %s199, 8
        %s203 = sadd.s32 %s201, %s202
        %s204 = smul.addr %s203, 8
        %s205 = scalar_lea.vmem %s3, %s204
        %s206 = smul.u32 8, %s22
        %p207 = scmp.lt.s32.totalorder %s21, 1
        %s208 = scalar_select %p207, %s21, 1
        %p209 = scmp.lt.s32.totalorder %s206, 7
        %s210 = scalar_select %p209, %s206, 7
        %s211 = smul.addr %s208, 8
        %s212 = sadd.s32 %s210, %s211
        %s213 = smul.addr %s212, 8
        %s214 = scalar_lea.vmem %s3, %s213
        %s215 = smul.u32 8, %s22
        %s216 = smul.u32 %s22, 8
        %s217 = smul.u32 %s216, 16
        %s218 = scalar_lea.vmem %s178, %s217 [#allocation2]
        %v219 = vld [vmem:[%s218] sm:$0xff]
        %v220 = vld [vmem:[%s218 + $0x10] sm:$0xff]
        %v221 = vld [vmem:[%s218 + $0x20] sm:$0xff]
        %v222 = vld [vmem:[%s218 + $0x30] sm:$0xff]
        %v223 = vld [vmem:[%s218 + $0x40] sm:$0xff]
        %v224 = vld [vmem:[%s218 + $0x50] sm:$0xff]
        %v225 = vld [vmem:[%s218 + $0x60] sm:$0xff]
        %v226 = vld [vmem:[%s218 + $0x70] sm:$0xff]
        %s227 = sadd.s32 8, %s217
        %s228 = scalar_lea.vmem %s178, %s227 [#allocation2]
        %v229 = vld [vmem:[%s228] sm:$0xff]
        %v230 = vld [vmem:[%s228 + $0x10] sm:$0xff]
        %v231 = vld [vmem:[%s228 + $0x20] sm:$0xff]
        %v232 = vld [vmem:[%s228 + $0x30] sm:$0xff]
        %v233 = vld [vmem:[%s228 + $0x40] sm:$0xff]
        %v234 = vld [vmem:[%s228 + $0x50] sm:$0xff]
        %v235 = vld [vmem:[%s228 + $0x60] sm:$0xff]
        %v236 = vld [vmem:[%s228 + $0x70] sm:$0xff]
        %s237 = sadd.s32 %s216, 1
        %s238 = smul.u32 %s237, 16
        %s239 = scalar_lea.vmem %s178, %s238 [#allocation2]
        %v240 = vld [vmem:[%s239] sm:$0xff]
        %v241 = vld [vmem:[%s239 + $0x10] sm:$0xff]
        %v242 = vld [vmem:[%s239 + $0x20] sm:$0xff]
        %v243 = vld [vmem:[%s239 + $0x30] sm:$0xff]
        %v244 = vld [vmem:[%s239 + $0x40] sm:$0xff]
        %v245 = vld [vmem:[%s239 + $0x50] sm:$0xff]
        %v246 = vld [vmem:[%s239 + $0x60] sm:$0xff]
        %v247 = vld [vmem:[%s239 + $0x70] sm:$0xff]
        %v248 = vld [vmem:[%s1] sm:$0xff]
        %v249 = vld [vmem:[%s1 + $0x8] sm:$0xf]
        %s250 = scalar_lea.vmem %s1, 16
        %v251 = vld [vmem:[%s250] sm:$0xff]
        %v252 = vld [vmem:[%s250 + $0x8] sm:$0xf]
        %vm253 = vcmask 97280
        %v255 = vsel %vm253, %v229, 0
        %v258 = vsel %vm253, %v230, 0
        %v261 = vsel %vm253, %v231, 0
        %v264 = vsel %vm253, %v232, 0
        %v267 = vsel %vm253, %v233, 0
        %v270 = vsel %vm253, %v234, 0
        %v273 = vsel %vm253, %v235, 0
        %v276 = vsel %vm253, %v236, 0
        %vm278 = vcmask 1043456
        %v280 = vsel %vm278, %v252, 0
        %282 = vmatpush.msra.mxu0 0.0
        %283 = vmatpush.msra.mxu0 0.0
        %284 = vmatpush.msra.mxu0 0.0
        %285 = vmatpush.msra.mxu0 0.0
        %286 = vmatpush.msra.mxu0 0.0
        %287 = vmatpush.msra.mxu0 0.0
        %288 = vmatpush.msra.mxu0 0.0
        %289 = vmatpush.msra.mxu0 0.0
        %290 = vmatpush.msra.mxu0 0.0
        %291 = vmatpush.msra.mxu0 0.0
        %292 = vmatpush.msra.mxu0 0.0
        %293 = vmatpush.msra.mxu0 0.0
        %294 = vmatpush.msra.mxu0 0.0
        %295 = vmatpush.msra.mxu0 0.0
        %296 = vmatpush.msra.mxu0 %v280
        %297 = vmatpush.msra.mxu0 %v251
        %298 = vmatmul.f32.gmra.mxu0 %v255
        %v299 = vpop.f32.mrf.mxu0
        %v300 = vadd.f32 0.0, %v299
        %301 = vmatmul.f32.gmra.mxu0 %v258
        %v302 = vpop.f32.mrf.mxu0
        %v303 = vadd.f32 0.0, %v302
        %304 = vmatmul.f32.gmra.mxu0 %v261
        %v305 = vpop.f32.mrf.mxu0
        %v306 = vadd.f32 0.0, %v305
        %307 = vmatmul.f32.gmra.mxu0 %v264
        %v308 = vpop.f32.mrf.mxu0
        %v309 = vadd.f32 0.0, %v308
        %310 = vmatmul.f32.gmra.mxu0 %v267
        %v311 = vpop.f32.mrf.mxu0
        %v312 = vadd.f32 0.0, %v311
        %313 = vmatmul.f32.gmra.mxu0 %v270
        %v314 = vpop.f32.mrf.mxu0
        %v315 = vadd.f32 0.0, %v314
        %316 = vmatmul.f32.gmra.mxu0 %v273
        %v317 = vpop.f32.mrf.mxu0
        %v318 = vadd.f32 0.0, %v317
        %319 = vmatmul.f32.gmra.mxu0 %v276
        %v320 = vpop.f32.mrf.mxu0
        %v321 = vadd.f32 0.0, %v320
        %322 = vdwg.mxu0
        %v324 = vsel %vm253, %v219, 0
        %v327 = vsel %vm253, %v220, 0
        %v330 = vsel %vm253, %v221, 0
        %v333 = vsel %vm253, %v222, 0
        %v336 = vsel %vm253, %v223, 0
        %v339 = vsel %vm253, %v224, 0
        %v342 = vsel %vm253, %v225, 0
        %v345 = vsel %vm253, %v226, 0
        %v348 = vsel %vm278, %v249, 0
        %350 = vmatpush.msra.mxu0 0.0
        %351 = vmatpush.msra.mxu0 0.0
        %352 = vmatpush.msra.mxu0 0.0
        %353 = vmatpush.msra.mxu0 0.0
        %354 = vmatpush.msra.mxu0 0.0
        %355 = vmatpush.msra.mxu0 0.0
        %356 = vmatpush.msra.mxu0 0.0
        %357 = vmatpush.msra.mxu0 0.0
        %358 = vmatpush.msra.mxu0 0.0
        %359 = vmatpush.msra.mxu0 0.0
        %360 = vmatpush.msra.mxu0 0.0
        %361 = vmatpush.msra.mxu0 0.0
        %362 = vmatpush.msra.mxu0 0.0
        %363 = vmatpush.msra.mxu0 0.0
        %364 = vmatpush.msra.mxu0 %v348
        %365 = vmatpush.msra.mxu0 %v248
        %366 = vmatmul.f32.gmra.mxu0 %v324
        %v367 = vpop.f32.mrf.mxu0
        %v368 = vadd.f32 %v300, %v367
        %369 = vmatmul.f32.gmra.mxu0 %v327
        %v370 = vpop.f32.mrf.mxu0
        %v371 = vadd.f32 %v303, %v370
        %372 = vmatmul.f32.gmra.mxu0 %v330
        %v373 = vpop.f32.mrf.mxu0
        %v374 = vadd.f32 %v306, %v373
        %375 = vmatmul.f32.gmra.mxu0 %v333
        %v376 = vpop.f32.mrf.mxu0
        %v377 = vadd.f32 %v309, %v376
        %378 = vmatmul.f32.gmra.mxu0 %v336
        %v379 = vpop.f32.mrf.mxu0
        %v380 = vadd.f32 %v312, %v379
        %381 = vmatmul.f32.gmra.mxu0 %v339
        %v382 = vpop.f32.mrf.mxu0
        %v383 = vadd.f32 %v315, %v382
        %384 = vmatmul.f32.gmra.mxu0 %v342
        %v385 = vpop.f32.mrf.mxu0
        %v386 = vadd.f32 %v318, %v385
        %387 = vmatmul.f32.gmra.mxu0 %v345
        %v388 = vpop.f32.mrf.mxu0
        %v389 = vadd.f32 %v321, %v388
        %390 = vdwg.mxu0
        %s391 = scalar_lea.vmem %s1, 32
        %v392 = vld [vmem:[%s391] sm:$0xff]
        %v393 = vld [vmem:[%s391 + $0x8] sm:$0xf]
        %v395 = vsel %vm253, %v240, 0
        %v398 = vsel %vm253, %v241, 0
        %v401 = vsel %vm253, %v242, 0
        %v404 = vsel %vm253, %v243, 0
        %v407 = vsel %vm253, %v244, 0
        %v410 = vsel %vm253, %v245, 0
        %v413 = vsel %vm253, %v246, 0
        %v416 = vsel %vm253, %v247, 0
        %v419 = vsel %vm278, %v393, 0
        %421 = vmatpush.msra.mxu0 0.0
        %422 = vmatpush.msra.mxu0 0.0
        %423 = vmatpush.msra.mxu0 0.0
        %424 = vmatpush.msra.mxu0 0.0
        %425 = vmatpush.msra.mxu0 0.0
        %426 = vmatpush.msra.mxu0 0.0
        %427 = vmatpush.msra.mxu0 0.0
        %428 = vmatpush.msra.mxu0 0.0
        %429 = vmatpush.msra.mxu0 0.0
        %430 = vmatpush.msra.mxu0 0.0
        %431 = vmatpush.msra.mxu0 0.0
        %432 = vmatpush.msra.mxu0 0.0
        %433 = vmatpush.msra.mxu0 0.0
        %434 = vmatpush.msra.mxu0 0.0
        %435 = vmatpush.msra.mxu0 %v419
        %436 = vmatpush.msra.mxu0 %v392
        %437 = vmatmul.f32.gmra.mxu0 %v395
        %v438 = vpop.f32.mrf.mxu0
        %v439 = vadd.f32 0.0, %v438
        %440 = vmatmul.f32.gmra.mxu0 %v398
        %v441 = vpop.f32.mrf.mxu0
        %v442 = vadd.f32 0.0, %v441
        %443 = vmatmul.f32.gmra.mxu0 %v401
        %v444 = vpop.f32.mrf.mxu0
        %v445 = vadd.f32 0.0, %v444
        %446 = vmatmul.f32.gmra.mxu0 %v404
        %v447 = vpop.f32.mrf.mxu0
        %v448 = vadd.f32 0.0, %v447
        %449 = vmatmul.f32.gmra.mxu0 %v407
        %v450 = vpop.f32.mrf.mxu0
        %v451 = vadd.f32 0.0, %v450
        %452 = vmatmul.f32.gmra.mxu0 %v410
        %v453 = vpop.f32.mrf.mxu0
        %v454 = vadd.f32 0.0, %v453
        %455 = vmatmul.f32.gmra.mxu0 %v413
        %v456 = vpop.f32.mrf.mxu0
        %v457 = vadd.f32 0.0, %v456
        %458 = vmatmul.f32.gmra.mxu0 %v416
        %v459 = vpop.f32.mrf.mxu0
        %v460 = vadd.f32 0.0, %v459
        %461 = vdwg.mxu0
        %v462 = vadd.f32 %v368, %v439
        %v463 = vadd.f32 %v371, %v442
        %v464 = vadd.f32 %v374, %v445
        %v465 = vadd.f32 %v377, %v448
        %v466 = vadd.f32 %v380, %v451
        %v467 = vadd.f32 %v383, %v454
        %v468 = vadd.f32 %v386, %v457
        %v469 = vadd.f32 %v389, %v460
        %v470 = vld [vmem:[%s2] sm:$0x1]
        %v472 = vperm.slane %v470, 0
        %v474 = vadd.f32 %v462, %v472
        %v475 = vadd.f32 %v463, %v472
        %v476 = vadd.f32 %v464, %v472
        %v477 = vadd.f32 %v465, %v472
        %v478 = vadd.f32 %v466, %v472
        %v479 = vadd.f32 %v467, %v472
        %v480 = vadd.f32 %v468, %v472
        %v481 = vadd.f32 %v469, %v472
        %vm482 = vcmask 31744
        %483 = vst.msk [vmem:[%s214] sm:$0xff] %vm482, %v474
        %484 = vst.msk [vmem:[%s214 + $0x8] sm:$0xff] %vm482, %v475
        %485 = vst.msk [vmem:[%s214 + $0x10] sm:$0xff] %vm482, %v476
        %486 = vst.msk [vmem:[%s214 + $0x18] sm:$0xff] %vm482, %v477
        %487 = vst.msk [vmem:[%s214 + $0x20] sm:$0xff] %vm482, %v478
        %488 = vst.msk [vmem:[%s214 + $0x28] sm:$0xff] %vm482, %v479
        %489 = vst.msk [vmem:[%s214 + $0x30] sm:$0xff] %vm482, %v480
        %490 = vst.msk [vmem:[%s214 + $0x38] sm:$0xff] %vm482, %v481
        %s491 = smul.u32 8, %s22
        %p492 = scmp.lt.s32.totalorder %s21, 1
        %s493 = scalar_select %p492, %s21, 1
        %p494 = scmp.lt.s32.totalorder %s491, 7
        %s495 = scalar_select %p494, %s491, 7
        %s496 = smul.addr %s493, 8
        %s497 = sadd.s32 %s495, %s496
        %s498 = smul.addr %s497, 8
        %s499 = scalar_lea.vmem %s3, %s498
        // Predicated region
        $region37: #{tpu_custom_call.1} parent=31 // pred_check
          %p500 = pneg %p117
        $region38: #{tpu_custom_call.1} parent=31 // pred_check_branch
          %502 = sbr.rel (%p500) target = $region40
        $region39: #{tpu_custom_call.1} parent=31 // pred_region
          %s503 = smul.u32 8, %s22
        $region40: #{tpu_custom_call.1} parent=31 // pred_fallthru
          _
      $region32: #{tpu_custom_call.1} parent=5 // pred_fallthru
        _
      %p504 = scmp.le.s32.totalorder 2, %s12
      // Predicated region
      $region41: #{tpu_custom_call.1} parent=5 // pred_check
        %p505 = pneg %p504
      $region42: #{tpu_custom_call.1} parent=5 // pred_check_branch
        %507 = sbr.rel (%p505) target = $region44
      $region43: #{tpu_custom_call.1} parent=5 // pred_region
        %s508 = ssub.s32 %s12, 2
        // Predicated region
        $region45: #{tpu_custom_call.1} parent=43 // pred_check
          %p509 = pneg %p123
        $region46: #{tpu_custom_call.1} parent=43 // pred_check_branch
          %511 = sbr.rel (%p509) target = $region48
        $region47: #{tpu_custom_call.1} parent=43 // pred_region
          %s512 = smul.u32 8, %s24
          %p513 = scmp.lt.s32.totalorder %s23, 1
          %s514 = scalar_select %p513, %s23, 1
          %p515 = scmp.lt.s32.totalorder %s512, 7
          %s516 = scalar_select %p515, %s512, 7
          %s517 = smul.addr %s514, 8
          %s518 = sadd.s32 %s516, %s517
          %s519 = smul.addr %s518, 8
          %s520 = scalar_lea.vmem %s3, %s519
        $region48: #{tpu_custom_call.1} parent=43 // pred_fallthru
          _
      $region44: #{tpu_custom_call.1} parent=5 // pred_fallthru
        _
    $region6: #{tpu_custom_call.1} parent=1 // loop_footer
      %s16 = sadd.s32 1, %s12
    $region7: #{tpu_custom_call.1} parent=1 // loop_footer_branch
      %11 = sbr.rel target = $region3
    $region8: #{tpu_custom_call.1} parent=1 // loop_exit
      _
    %521 = vsyncpa [#allocation3], 1
    %s522 = scalar_lea.sflag [#allocation3], 1
    %523 = vsyncpa %s522, 1

</llo_original>
